<compile_context>
chip_gen: v7x
topology: tpu7x:2x2x1
jax: 0.10.0
libtpu: 0.0.40
codegen_flags: <defaults>
</compile_context>

<pallas_src>
import functools

import jax
import jax.numpy as jnp
from jax import lax
from jax.experimental import pallas as pl
from jax.experimental.pallas import tpu as pltpu


def _style_loss_kernel(f_ref, t_ref, g_ref, loss_ref, acc_ref, *, weight, norm):
    # f_ref:    [M, TK] features chunk (bf16 or f32) in VMEM
    # t_ref:    [M, M]  target gram (already * weight), f32, resident in VMEM
    # g_ref:    [M, M]  output gram * weight, f32
    # loss_ref: [1, 1]  scalar MSE loss in SMEM
    # acc_ref:  [M, M]  f32 gram accumulator, VMEM scratch
    k = pl.program_id(0)

    @pl.when(k == 0)
    def _init():
        acc_ref[...] = jnp.zeros_like(acc_ref)

    f = f_ref[...]
    # f @ f.T expressed as a contraction over the last dim of both operands:
    # avoids materializing an explicit [TK, M] transpose through the XLU and
    # keeps the inner loop to a single MXU push + accumulate.
    acc_ref[...] += lax.dot_general(
        f, f,
        dimension_numbers=(((1,), (1,)), ((), ())),
        preferred_element_type=jnp.float32,
    )

    @pl.when(k == pl.num_programs(0) - 1)
    def _epilogue():
        # .div(a*b*c*d) then .mul_(weight), folded into one scale, done once.
        gram = acc_ref[...] * jnp.float32(weight / norm)
        g_ref[...] = gram
        diff = gram - t_ref[...]
        loss_ref[0, 0] = jnp.mean(diff * diff)


def style_loss_forward(x, target_scaled, weight, *,
                       feature_dtype=jnp.bfloat16, max_tk=2048):
    """x: [a, b, c, d] NCHW feature map. target_scaled: [a*b, a*b] (= target*weight).

    Returns (output, gram_weighted, loss) where output == x (clone semantics).

    The kernel is HBM-bandwidth bound for small a*b, so features are streamed
    in bf16 by default (f32 accumulation); pass feature_dtype=jnp.float32 for
    bit-faithful gram values. max_tk≈2048 keeps double-buffered K-chunks well
    inside the default scoped-VMEM limit on v5e/v6e/v7x.
    """
    a, b, c, d = x.shape
    m = a * b
    n = c * d
    norm = float(a * b * c * d)

    features = x.reshape(m, n).astype(feature_dtype)

    # Choose the K-tile: full N if it already fits one lane-dense block,
    # otherwise a multiple of 128 capped at max_tk, zero-padding the tail
    # (zero columns contribute nothing to the gram).
    if n <= max_tk:
        tk = n
        n_pad = n
    else:
        tk = max(128, (max_tk // 128) * 128)
        n_pad = pl.cdiv(n, tk) * tk
        if n_pad != n:
            features = jnp.pad(features, ((0, 0), (0, n_pad - n)))
    grid_k = n_pad // tk

    kernel = functools.partial(_style_loss_kernel,
                               weight=float(weight), norm=norm)

    gram_w, loss = pl.pallas_call(
        kernel,
        out_shape=(
            jax.ShapeDtypeStruct((m, m), jnp.float32),
            jax.ShapeDtypeStruct((1, 1), jnp.float32),
        ),
        grid_spec=pltpu.PrefetchScalarGridSpec(
            num_scalar_prefetch=0,
            grid=(grid_k,),
            in_specs=[
                pl.BlockSpec((m, tk), lambda k: (0, k)),   # streamed K-chunks
                pl.BlockSpec((m, m), lambda k: (0, 0)),    # target, resident
            ],
            out_specs=(
                pl.BlockSpec((m, m), lambda k: (0, 0)),    # gram * weight
                pl.BlockSpec(memory_space=pltpu.SMEM),     # scalar loss
            ),
            scratch_shapes=[pltpu.VMEM((m, m), jnp.float32)],
        ),
        compiler_params=pltpu.CompilerParams(
            dimension_semantics=("arbitrary",),            # K is a reduction
        ),
    )(features, target_scaled.astype(jnp.float32))

    # forward() returns input.clone(); in JAX arrays are immutable, so x itself.
    # TODO(synk): backward() (autograd of the loss) is not implemented here.
    return x, gram_w, loss[0, 0]


def _gram_reference(x):
    a, b, c, d = x.shape
    f = x.reshape(a * b, c * d)
    return (f @ f.T) / float(a * b * c * d)


if __name__ == "__main__":
    key = jax.random.PRNGKey(0)
    k_in, k_style = jax.random.split(key)

    # Small NCHW shapes: a=2 (batch), b=4 (channels), c=d=16 (spatial).
    a, b, c, d = 2, 4, 16, 16
    weight = 1000.0

    x = jax.random.normal(k_in, (a, b, c, d), dtype=jnp.float32)

    # Deterministic "style target": gram matrix of a synthetic style feature,
    # detached and pre-multiplied by weight (as in StyleLoss.__init__).
    style_feat = jax.random.normal(k_style, (a, b, c, d), dtype=jnp.float32)
    target_scaled = _gram_reference(style_feat) * weight

    # Pure-JAX reference.
    gram_ref = _gram_reference(x) * weight
    loss_ref = jnp.mean((gram_ref - target_scaled) ** 2)

    # 1) f32 feature path with a forced 128-wide K-tile -> grid of 2 steps,
    #    exercising the accumulator init / epilogue logic. Tight tolerances.
    out, gram_w, loss = style_loss_forward(
        x, target_scaled, weight, feature_dtype=jnp.float32, max_tk=128)
    jax.block_until_ready((out, gram_w, loss))
    assert jnp.allclose(out, x)
    assert jnp.allclose(gram_w, gram_ref, rtol=1e-5, atol=1e-5)
    assert jnp.allclose(loss, loss_ref, rtol=1e-5, atol=1e-5)

    # 2) Default bf16 streaming path (single K-block at this toy size).
    #    Looser tolerances: bf16 inputs, f32 accumulation.
    out_b, gram_b, loss_b = style_loss_forward(x, target_scaled, weight)
    jax.block_until_ready((out_b, gram_b, loss_b))
    assert jnp.allclose(out_b, x)
    assert jnp.allclose(gram_b, gram_ref, rtol=2e-2, atol=0.5)
    assert jnp.allclose(loss_b, loss_ref, rtol=2e-2, atol=0.5)

    print("KERNEL_OK")
</pallas_src>

<mosaic_0001>
module attributes {stable_mosaic.version = 11 : i64} {
  func.func @_style_loss_kernel(%arg0: i32, %arg1: memref<8x128xf32, #tpu.memory_space<vmem>>, %arg2: memref<8x8xf32, #tpu.memory_space<vmem>>, %arg3: memref<8x8xf32, #tpu.memory_space<vmem>>, %arg4: memref<1x1xf32, #tpu.memory_space<smem>>, %arg5: memref<8x8xf32, #tpu.memory_space<vmem>>) attributes {dimension_semantics = [#tpu.dimension_semantics<arbitrary>], iteration_bounds = array<i64: 2>, scalar_prefetch = 0 : i64, scratch_operands = 1 : i64, tpu.core_type = #tpu.core_type<tc>, window_params = [{transform_indices = @transform_0, window_bounds = array<i64: 8, 128>}, {pipeline_mode = #tpu.pipeline_mode<synchronous>, transform_indices = @transform_1, window_bounds = array<i64: 8, 8>}, {pipeline_mode = #tpu.pipeline_mode<synchronous>, transform_indices = @transform_2, window_bounds = array<i64: 8, 8>}, {transform_indices = @transform_3, window_bounds = array<i64: 1, 1>}]} {
    %c0_i32 = arith.constant 0 : i32
    %0 = arith.cmpi eq, %arg0, %c0_i32 : i32
    %1 = arith.extui %0 : i1 to i32
    %c0_i32_0 = arith.constant 0 : i32
    %2 = arith.cmpi ne, %1, %c0_i32_0 : i32
    scf.if %2 {
      %cst_7 = arith.constant 0.000000e+00 : f32
      %11 = vector.broadcast %cst_7 : f32 to vector<8x8xf32>
      %c0_8 = arith.constant 0 : index
      %c0_9 = arith.constant 0 : index
      %12 = vector.load %arg5[%c0_8, %c0_9] : memref<8x8xf32, #tpu.memory_space<vmem>>, vector<8x8xf32>
      tpu.vector_store %arg5[%c0_8, %c0_9], %11 {strides = array<i32>} : memref<8x8xf32, #tpu.memory_space<vmem>>, vector<8x8xf32>,
    } else {
    }
    %c0 = arith.constant 0 : index
    %c0_1 = arith.constant 0 : index
    %3 = vector.load %arg1[%c0, %c0_1] : memref<8x128xf32, #tpu.memory_space<vmem>>, vector<8x128xf32>
    %c0_2 = arith.constant 0 : index
    %c0_3 = arith.constant 0 : index
    %4 = vector.load %arg5[%c0_2, %c0_3] : memref<8x8xf32, #tpu.memory_space<vmem>>, vector<8x8xf32>
    %cst = arith.constant dense<0.000000e+00> : vector<8x8xf32>
    %5 = tpu.matmul %3, %3, %cst {dimension_numbers = #tpu.dot_dimension_numbers<[1], [1], [0], [0], [0, 0, 1, 0], [], []>} : vector<8x128xf32>, vector<8x128xf32>, vector<8x8xf32> -> vector<8x8xf32>
    %6 = arith.addf %4, %5 : vector<8x8xf32>
    %c0_4 = arith.constant 0 : index
    %c0_5 = arith.constant 0 : index
    %7 = vector.load %arg5[%c0_4, %c0_5] : memref<8x8xf32, #tpu.memory_space<vmem>>, vector<8x8xf32>
    tpu.vector_store %arg5[%c0_4, %c0_5], %6 {strides = array<i32>} : memref<8x8xf32, #tpu.memory_space<vmem>>, vector<8x8xf32>,
    %c1_i32 = arith.constant 1 : i32
    %8 = arith.cmpi eq, %arg0, %c1_i32 : i32
    %9 = arith.extui %8 : i1 to i32
    %c0_i32_6 = arith.constant 0 : i32
    %10 = arith.cmpi ne, %9, %c0_i32_6 : i32
    scf.if %10 {
      %c0_7 = arith.constant 0 : index
      %c0_8 = arith.constant 0 : index
      %11 = vector.load %arg5[%c0_7, %c0_8] : memref<8x8xf32, #tpu.memory_space<vmem>>, vector<8x8xf32>
      %cst_9 = arith.constant 0.48828125 : f32
      %12 = vector.broadcast %cst_9 : f32 to vector<8x8xf32>
      %13 = arith.mulf %11, %12 : vector<8x8xf32>
      %c0_10 = arith.constant 0 : index
      %c0_11 = arith.constant 0 : index
      %14 = vector.load %arg3[%c0_10, %c0_11] : memref<8x8xf32, #tpu.memory_space<vmem>>, vector<8x8xf32>
      tpu.vector_store %arg3[%c0_10, %c0_11], %13 {strides = array<i32>} : memref<8x8xf32, #tpu.memory_space<vmem>>, vector<8x8xf32>,
      %c0_12 = arith.constant 0 : index
      %c0_13 = arith.constant 0 : index
      %15 = vector.load %arg2[%c0_12, %c0_13] : memref<8x8xf32, #tpu.memory_space<vmem>>, vector<8x8xf32>
      %16 = arith.subf %13, %15 : vector<8x8xf32>
      %17 = arith.mulf %16, %16 : vector<8x8xf32>
      %18 = vector.shape_cast %17 : vector<8x8xf32> to vector<1x8x8xf32>
      %cst_14 = arith.constant dense<0.000000e+00> : vector<1xf32>
      %19 = vector.multi_reduction <add>, %18, %cst_14 [1, 2] : vector<1x8x8xf32> to vector<1xf32>
      %20 = vector.shape_cast %19 : vector<1xf32> to vector<1x1x1xf32>
      %21 = vector.extract %20[0, 0, 0] : f32 from vector<1x1x1xf32>
      %cst_15 = arith.constant 6.400000e+01 : f32
      %22 = arith.divf %21, %cst_15 : f32
      %c0_16 = arith.constant 0 : index
      %c0_17 = arith.constant 0 : index
      %23 = memref.load %arg4[%c0_16, %c0_17] : memref<1x1xf32, #tpu.memory_space<smem>>
      memref.store %22, %arg4[%c0_16, %c0_17] : memref<1x1xf32, #tpu.memory_space<smem>>
    } else {
    }
    return
  }
  func.func @transform_0(%arg0: i32) -> (i32, i32) {
    %c0_i32 = arith.constant 0 : i32
    %c0_i32_0 = arith.constant 0 : i32
    return %c0_i32, %arg0 : i32, i32
  }
  func.func @transform_1(%arg0: i32) -> (i32, i32) {
    %c0_i32 = arith.constant 0 : i32
    %c0_i32_0 = arith.constant 0 : i32
    %c0_i32_1 = arith.constant 0 : i32
    return %c0_i32, %c0_i32_0 : i32, i32
  }
  func.func @transform_2(%arg0: i32) -> (i32, i32) {
    %c0_i32 = arith.constant 0 : i32
    %c0_i32_0 = arith.constant 0 : i32
    %c0_i32_1 = arith.constant 0 : i32
    return %c0_i32, %c0_i32_0 : i32, i32
  }
  func.func @transform_3(%arg0: i32) -> (i32, i32) {
    %c0_i32 = arith.constant 0 : i32
    %c0_i32_0 = arith.constant 0 : i32
    %c0_i32_1 = arith.constant 0 : i32
    return %c0_i32, %c0_i32_0 : i32, i32
  }
}

</mosaic_0001>

<llo_original>
// kernel: tpu_custom_call.1
$region0: #{tpu_custom_call.1}
  #allocation0 [shape = 'u32[]', space=smem, size = 0x4, offset = 0x4, fixed_abs, tag = 'smem constant byte address 0x4 - core index']
  #allocation1 [shape = 'u32[144,128]{1,0:T(1,128)}', space=vmem, size = 0x12000, scoped, tag = 'internal scratch']
  #allocation2 [shape = 'f32[8,8]{1,0:T(8,128)}', space=vmem, size = 0x1000, scoped, tag = 'scratch operand']
  %s0 = inlined_call_operand.hbm [shape: f32[8,256], index: 0, kind: input, shape index: {}]
  %s1 = inlined_call_operand.hbm [shape: f32[8,8], index: 1, kind: input, shape index: {}]
  %s2 = inlined_call_operand.hbm [shape: f32[8,8], index: 2, kind: output, shape index: {0}]
  %s3 = inlined_call_operand.hbm [shape: f32[1,1], index: 3, kind: output, shape index: {1}]
  %4 = xla_tuple %s2, %s3
  %s5 = sld [smem:[#allocation0]]
  $region65: #{tpu_custom_call.1} parent=0
    _
  %s7 = ssub.s32 1, %s5
  %s8 = scalar_select 0, %s7, %s5
  $region1: #{tpu_custom_call.1} parent=0
    #allocation3 [shape = 'u8[8192]{0}', space=vmem, size = 0x2000, scoped, tag = 'input window, operand 0']
    #allocation4 [shape = 's32[2]{0}', space=sflag, size = 0x8, scoped, tag = 'scoped memory for tpu_custom_call.1']
    #allocation5 [shape = 's32[2]{0}', space=sflag, size = 0x8, scoped, tag = 'scoped memory for tpu_custom_call.1']
    #allocation6 [shape = 's32[2]{0}', space=sflag, size = 0x8, scoped, tag = 'scoped memory for tpu_custom_call.1']
    #allocation7 [shape = 'u8[4096]{0}', space=vmem, size = 0x1000, scoped, tag = 'input window, operand 1, single buffered']
    #allocation8 [shape = 's32[1]{0}', space=sflag, size = 0x4, scoped, tag = 'scoped memory for tpu_custom_call.1']
    #allocation9 [shape = 'u8[4096]{0}', space=vmem, size = 0x1000, scoped, tag = 'output window, operand 0, single buffered']
    #allocation10 [shape = 'u8[512]{0}', space=smem, size = 0x200, scoped, tag = 'output window, operand 1, single buffered']
    %9 = vsyncpa [#allocation4], 0
    %s10 = scalar_lea.sflag [#allocation4], 1
    %11 = vsyncpa %s10, 0
    %12 = vsyncpa [#allocation8], 0
    %13 = vsyncpa [#allocation5], 0
    %14 = vsyncpa [#allocation6], 0
    loop: start=0, step=1, limit=4
    $region2: #{tpu_custom_call.1} parent=1 // loop_pre_header
      _
    $region3: #{tpu_custom_call.1} parent=1 // loop_header
      %s16 = sphi 0, %s20
      %p17 = scmp.ge.s32.totalorder %s16, 4
      %s26 = sphi 0, %s28
      %s29 = sphi 0, %s26
      %s30 = sphi 0, %s29
      %s46 = sphi 0, %s30
      %s50 = sphi 0, %s50
      %s52 = sphi 0, %s50
      %s53 = sphi 0, %s52
      %s67 = sphi 0, %s53
      %s71 = sphi 0, %s71
      %s73 = sphi 0, %s71
      %s74 = sphi 0, %s73
      %s88 = sphi 0, %s74
      %s92 = sphi 0, %s92
      %s94 = sphi 0, %s92
      %s95 = sphi 0, %s94
      %s109 = sphi 0, %s95
    $region4: #{tpu_custom_call.1} parent=1 // loop_header_branch
      %19 = sbr.rel (%p17) target = $region8
    $region5: #{tpu_custom_call.1} parent=1 // loop_body
      %s21 = ssub.s32 %s16, 1
      %s22 = ssub.s32 %s16, 2
      %s23 = sadd.s32 %s16, 1
      %s24 = ssub.s32 %s16, %s23
      %p25 = scmp.eq.s32.totalorder %s24, 0
      %s27 = sadd.s32 %s26, 1
      %s28 = scalar_select %p25, %s26, %s27
      %p31 = pneg %p25
      %p32 = scmp.eq.s32.totalorder %s16, 1
      %p33 = por %p31, %p32
      %p34 = scmp.ne.s32.totalorder %s26, %s29
      %p35 = scmp.eq.s32.totalorder %s16, 0
      %p36 = por %p34, %p35
      %p37 = scmp.ne.s32.totalorder %s26, %s29
      %p38 = scmp.eq.s32.totalorder %s21, 1
      %p39 = por %p37, %p38
      %p40 = scmp.ne.s32.totalorder %s29, %s30
      %p41 = scmp.eq.s32.totalorder %s21, 0
      %p42 = por %p40, %p41
      %p43 = scmp.ne.s32.totalorder %s29, %s30
      %p44 = scmp.eq.s32.totalorder %s22, 1
      %p45 = por %p43, %p44
      %p47 = scmp.ne.s32.totalorder %s30, %s46
      %p48 = scmp.eq.s32.totalorder %s22, 0
      %p49 = por %p47, %p48
      %s51 = sadd.s32 %s50, 1
      %p54 = scmp.eq.s32.totalorder %s16, 1
      %p55 = scmp.ne.s32.totalorder %s50, %s52
      %p56 = scmp.eq.s32.totalorder %s16, 0
      %p57 = por %p55, %p56
      %p58 = scmp.ne.s32.totalorder %s50, %s52
      %p59 = scmp.eq.s32.totalorder %s21, 1
      %p60 = por %p58, %p59
      %p61 = scmp.ne.s32.totalorder %s52, %s53
      %p62 = scmp.eq.s32.totalorder %s21, 0
      %p63 = por %p61, %p62
      %p64 = scmp.ne.s32.totalorder %s52, %s53
      %p65 = scmp.eq.s32.totalorder %s22, 1
      %p66 = por %p64, %p65
      %p68 = scmp.ne.s32.totalorder %s53, %s67
      %p69 = scmp.eq.s32.totalorder %s22, 0
      %p70 = por %p68, %p69
      %s72 = sadd.s32 %s71, 1
      %p75 = scmp.eq.s32.totalorder %s16, 1
      %p76 = scmp.ne.s32.totalorder %s71, %s73
      %p77 = scmp.eq.s32.totalorder %s16, 0
      %p78 = por %p76, %p77
      %p79 = scmp.ne.s32.totalorder %s71, %s73
      %p80 = scmp.eq.s32.totalorder %s21, 1
      %p81 = por %p79, %p80
      %p82 = scmp.ne.s32.totalorder %s73, %s74
      %p83 = scmp.eq.s32.totalorder %s21, 0
      %p84 = por %p82, %p83
      %p85 = scmp.ne.s32.totalorder %s73, %s74
      %p86 = scmp.eq.s32.totalorder %s22, 1
      %p87 = por %p85, %p86
      %p89 = scmp.ne.s32.totalorder %s74, %s88
      %p90 = scmp.eq.s32.totalorder %s22, 0
      %p91 = por %p89, %p90
      %s93 = sadd.s32 %s92, 1
      %p96 = scmp.eq.s32.totalorder %s16, 1
      %p97 = scmp.ne.s32.totalorder %s92, %s94
      %p98 = scmp.eq.s32.totalorder %s16, 0
      %p99 = por %p97, %p98
      %p100 = scmp.ne.s32.totalorder %s92, %s94
      %p101 = scmp.eq.s32.totalorder %s21, 1
      %p102 = por %p100, %p101
      %p103 = scmp.ne.s32.totalorder %s94, %s95
      %p104 = scmp.eq.s32.totalorder %s21, 0
      %p105 = por %p103, %p104
      %p106 = scmp.ne.s32.totalorder %s94, %s95
      %p107 = scmp.eq.s32.totalorder %s22, 1
      %p108 = por %p106, %p107
      %p110 = scmp.ne.s32.totalorder %s95, %s109
      %p111 = scmp.eq.s32.totalorder %s22, 0
      %p112 = por %p110, %p111
      %p113 = scmp.le.s32.totalorder 1, %s16
      %p114 = scmp.lt.s32.totalorder %s16, 3
      %p115 = pnand %p113, %p114
      %p116 = pneg %p115
      // Predicated region
      $region9: #{tpu_custom_call.1} parent=5 // pred_check
        _
      $region10: #{tpu_custom_call.1} parent=5 // pred_check_branch
        %118 = sbr.rel (%p115) target = $region12
      $region11: #{tpu_custom_call.1} parent=5 // pred_region
        %s119 = ssub.s32 %s16, 1
        // Predicated region
        $region13: #{tpu_custom_call.1} parent=11 // pred_check
          %p120 = pneg %p63
        $region14: #{tpu_custom_call.1} parent=11 // pred_check_branch
          %122 = sbr.rel (%p120) target = $region16
        $region15: #{tpu_custom_call.1} parent=11 // pred_region
          %s124 = ssub.s32 128, 128
          %125 = vsyncadd [#allocation8], %s124
          %s127 = sshll.u32 [#allocation7], 4
          %s128 = int_to_ptr.vmem [resolvable:$true] %s127
          %130 = dma.hbm_to_vmem [thread:$0]  %s1, 128, %s128, [#allocation8]
        $region16: #{tpu_custom_call.1} parent=11 // pred_fallthru
          _
      $region12: #{tpu_custom_call.1} parent=5 // pred_fallthru
        _
      %p131 = scmp.lt.s32.totalorder %s16, 2
      // Predicated region
      $region17: #{tpu_custom_call.1} parent=5 // pred_check
        %p132 = pneg %p131
      $region18: #{tpu_custom_call.1} parent=5 // pred_check_branch
        %134 = sbr.rel (%p132) target = $region20
      $region19: #{tpu_custom_call.1} parent=5 // pred_region
        // Predicated region
        $region21: #{tpu_custom_call.1} parent=19 // pred_check
          %p135 = pneg %p36
        $region22: #{tpu_custom_call.1} parent=19 // pred_check_branch
          %137 = sbr.rel (%p135) target = $region24
        $region23: #{tpu_custom_call.1} parent=19 // pred_region
          %s138 = sand.u32 %s26, 1
          %s139 = scalar_lea.sflag [#allocation4], %s138
          %s140 = sand.u32 %s26, 1
          %s141 = smul.addr %s140, 8
          %s142 = scalar_lea.vmem [#allocation3], %s141
          %s144 = ssub.s32 128, 128
          %145 = vsyncadd %s139, %s144
          %s146 = smul.addr %s16, 128
          %s147 = scalar_lea.hbm %s0, %s146
          %s149 = sshll.u32 %s142, 4
          %s150 = int_to_ptr.vmem [resolvable:$true] %s149
          %152 = dma.hbm_to_vmem [thread:$0]  %s147, 128, %s150, %s139
        $region24: #{tpu_custom_call.1} parent=19 // pred_fallthru
          _
      $region20: #{tpu_custom_call.1} parent=5 // pred_fallthru
        _
      %p153 = scmp.le.s32.totalorder 1, %s16
      %p154 = scmp.lt.s32.totalorder %s16, 3
      %p155 = pnand %p153, %p154
      %p156 = pneg %p155
      // Predicated region
      $region25: #{tpu_custom_call.1} parent=5 // pred_check
        _
      $region26: #{tpu_custom_call.1} parent=5 // pred_check_branch
        %158 = sbr.rel (%p155) target = $region28
      $region27: #{tpu_custom_call.1} parent=5 // pred_region
        %s159 = ssub.s32 %s16, 1
        %s160 = sand.u32 %s29, 1
        %s161 = scalar_lea.sflag [#allocation4], %s160
        %s162 = sand.u32 %s29, 1
        %s163 = smul.addr %s162, 8
        %s164 = scalar_lea.vmem [#allocation3], %s163
        // Predicated region
        $region29: #{tpu_custom_call.1} parent=27 // pred_check
          %p165 = pneg %p42
        $region30: #{tpu_custom_call.1} parent=27 // pred_check_branch
          %167 = sbr.rel (%p165) target = $region32
        $region31: #{tpu_custom_call.1} parent=27 // pred_region
          %168 = dma.done %s161, 128
        $region32: #{tpu_custom_call.1} parent=27 // pred_fallthru
          _
        // Predicated region
        $region33: #{tpu_custom_call.1} parent=27 // pred_check
          %p169 = pneg %p63
        $region34: #{tpu_custom_call.1} parent=27 // pred_check_branch
          %171 = sbr.rel (%p169) target = $region36
        $region35: #{tpu_custom_call.1} parent=27 // pred_region
          %172 = dma.done [#allocation8], 128
        $region36: #{tpu_custom_call.1} parent=27 // pred_fallthru
          _
        %s173 = sand.u32 %s29, 1
        %s174 = scalar_lea.sflag [#allocation4], %s173
        %s175 = sand.u32 %s29, 1
        %s176 = smul.addr %s175, 8
        %s177 = scalar_lea.vmem [#allocation3], %s176
        %p178 = pneg %p42
        %p179 = pneg %p39
        %p180 = pneg %p63
        %p181 = pneg %p60
        %p182 = pneg %p84
        %p183 = pneg %p81
        %p184 = pneg %p105
        %p185 = pneg %p102
        %p186 = scmp.eq.s32.totalorder %s21, 0
        // Predicated region
        $region37: #{tpu_custom_call.1} parent=27 // pred_check
          %p187 = pneg %p186
        $region38: #{tpu_custom_call.1} parent=27 // pred_check_branch
          %189 = sbr.rel (%p187) target = $region40
        $region39: #{tpu_custom_call.1} parent=27 // pred_region
          %vm190 = vcmask 64512
          %191 = vst.msk [vmem:[#allocation2] sm:$0xff] %vm190, 0.0
        $region40: #{tpu_custom_call.1} parent=27 // pred_fallthru
          _
        %v192 = vld [vmem:[%s164] sm:$0xff]
        %v193 = vld [vmem:[#allocation2] sm:$0xff]
        %194 = vmatprep.subr.mxu0 0.0
        %195 = vmatpush1.xpose.msra.mxu0 %v192
        %196 = vmatprep.subr.mxu0 0.0
        %197 = vmatpush1.xpose.msra.mxu0 0.0
        %198 = vmatprep.subr.mxu0 0.0
        %199 = vmatpush1.xpose.msra.mxu0 0.0
        %200 = vmatprep.subr.mxu0 0.0
        %201 = vmatpush1.xpose.msra.mxu0 0.0
        %202 = vmatprep.subr.mxu0 0.0
        %203 = vmatpush1.xpose.msra.mxu0 0.0
        %204 = vmatprep.subr.mxu0 0.0
        %205 = vmatpush1.xpose.msra.mxu0 0.0
        %206 = vmatprep.subr.mxu0 0.0
        %207 = vmatpush1.xpose.msra.mxu0 0.0
        %208 = vmatprep.subr.mxu0 0.0
        %209 = vmatpush1.xpose.msra.mxu0 0.0
        %210 = vmatprep.subr.mxu0 0.0
        %211 = vmatpush1.xpose.msra.mxu0 0.0
        %212 = vmatprep.subr.mxu0 0.0
        %213 = vmatpush1.xpose.msra.mxu0 0.0
        %214 = vmatprep.subr.mxu0 0.0
        %215 = vmatpush1.xpose.msra.mxu0 0.0
        %216 = vmatprep.subr.mxu0 0.0
        %217 = vmatpush1.xpose.msra.mxu0 0.0
        %218 = vmatprep.subr.mxu0 0.0
        %219 = vmatpush1.xpose.msra.mxu0 0.0
        %220 = vmatprep.subr.mxu0 0.0
        %221 = vmatpush1.xpose.msra.mxu0 0.0
        %222 = vmatprep.subr.mxu0 0.0
        %223 = vmatpush1.xpose.msra.mxu0 0.0
        %224 = vmatprep.subr.mxu0 0.0
        %225 = vmatpush1.xpose.msra.mxu0 0.0
        %226 = vmatprep.subr.mxu0 0.0
        %227 = vmatpush1.xpose.msra.mxu0 0.0
        %228 = vmatprep.subr.mxu0 0.0
        %229 = vmatpush1.xpose.msra.mxu0 0.0
        %230 = vmatprep.subr.mxu0 0.0
        %231 = vmatpush1.xpose.msra.mxu0 0.0
        %232 = vmatprep.subr.mxu0 0.0
        %233 = vmatpush1.xpose.msra.mxu0 0.0
        %234 = vmatprep.subr.mxu0 0.0
        %235 = vmatpush1.xpose.msra.mxu0 0.0
        %236 = vmatprep.subr.mxu0 0.0
        %237 = vmatpush1.xpose.msra.mxu0 0.0
        %238 = vmatprep.subr.mxu0 0.0
        %239 = vmatpush1.xpose.msra.mxu0 0.0
        %240 = vmatprep.subr.mxu0 0.0
        %241 = vmatpush1.xpose.msra.mxu0 0.0
        %242 = vmatprep.subr.mxu0 0.0
        %243 = vmatpush1.xpose.msra.mxu0 0.0
        %244 = vmatprep.subr.mxu0 0.0
        %245 = vmatpush1.xpose.msra.mxu0 0.0
        %246 = vmatprep.subr.mxu0 0.0
        %247 = vmatpush1.xpose.msra.mxu0 0.0
        %248 = vmatprep.subr.mxu0 0.0
        %249 = vmatpush1.xpose.msra.mxu0 0.0
        %250 = vmatprep.subr.mxu0 0.0
        %251 = vmatpush1.xpose.msra.mxu0 0.0
        %252 = vmatprep.subr.mxu0 0.0
        %253 = vmatpush1.xpose.msra.mxu0 0.0
        %254 = vmatprep.subr.mxu0 0.0
        %255 = vmatpush1.xpose.msra.mxu0 0.0
        %256 = vmatprep.subr.mxu0 0.0
        %257 = vmatpush1.xpose.msra.mxu0 0.0
        %258 = vmatprep.mubr.f32.mxu0 0.0
        %259 = vmatmul.mubr.f32.gmra.mrb[0].mxu0 %v192
        %v260 = vpop.f32.mrb[0].mxu0
        %v261 = vadd.f32 0.0, %v260
        %v262 = vpop.f32.mrb[0].mxu0
        %263 = vdwg.mxu0
        %v264 = vadd.f32 %v193, %v261
        %vm265 = vcmask 64512
        %266 = vst.msk [vmem:[#allocation2] sm:$0xff] %vm265, %v264
        %p267 = scmp.eq.s32.totalorder %s21, 1
        // Predicated region
        $region41: #{tpu_custom_call.1} parent=27 // pred_check
          %p268 = pneg %p267
        $region42: #{tpu_custom_call.1} parent=27 // pred_check_branch
          %270 = sbr.rel (%p268) target = $region44
        $region43: #{tpu_custom_call.1} parent=27 // pred_region
          %v271 = vld [vmem:[#allocation2] sm:$0xff]
          %v272 = vmul.f32 %v271, 0.48828125
          %273 = vst.msk [vmem:[#allocation9] sm:$0xff] %vm265, %v272
          %v274 = vld [vmem:[#allocation7] sm:$0xff]
          %v275 = vsub.f32 %v272, %v274
          %v276 = vmul.f32 %v275, %v275
          %v277 = vsel %vm265, %v276, 0.0
          %278 = vadd.xlane.f32.xlu0 %v277
          %v279 = vpop.xlane.xlu0 %278
          %v280 = vrot.slane %v279, 4
          %v281 = vadd.f32 %v279, %v280
          %v282 = vrot.slane %v281, 2
          %v283 = vadd.f32 %v281, %v282
          %v284 = vrot.slane %v283, 1
          %v285 = vadd.f32 %v283, %v284
          %s286 = vtos %v285
          %v287 = vrcp.pop 64.0
          %s288 = vtos %v287
          %s289 = smul.f32 %s286, %s288
          %s290 = scalar_lea.smem [#allocation10], 0
          %291 = sst [smem:[%s290]] %s289
        $region44: #{tpu_custom_call.1} parent=27 // pred_fallthru
          _
        // Predicated region
        $region45: #{tpu_custom_call.1} parent=27 // pred_check
          %p292 = pneg %p81
        $region46: #{tpu_custom_call.1} parent=27 // pred_check_branch
          %294 = sbr.rel (%p292) target = $region48
        $region47: #{tpu_custom_call.1} parent=27 // pred_region
          %s296 = ssub.s32 128, 128
          %297 = vsyncadd [#allocation5], %s296
          %s299 = sshll.u32 [#allocation9], 4
          %s300 = int_to_ptr.vmem [resolvable:$true] %s299
          %302 = dma.vmem_to_hbm [thread:$0]  %s300, 128, %s2, [#allocation5]
        $region48: #{tpu_custom_call.1} parent=27 // pred_fallthru
          _
        // Predicated region
        $region49: #{tpu_custom_call.1} parent=27 // pred_check
          %p303 = pneg %p102
        $region50: #{tpu_custom_call.1} parent=27 // pred_check_branch
          %305 = sbr.rel (%p303) target = $region52
        $region51: #{tpu_custom_call.1} parent=27 // pred_region
          %s307 = ssub.s32 16, 16
          %308 = vsyncadd [#allocation6], %s307
          %311 = dma.smem_to_hbm [#allocation10], 16, %s3, [#allocation6]
        $region52: #{tpu_custom_call.1} parent=27 // pred_fallthru
          _
        // Predicated region
        $region53: #{tpu_custom_call.1} parent=27 // pred_check
          %p312 = pneg %p81
        $region54: #{tpu_custom_call.1} parent=27 // pred_check_branch
          %314 = sbr.rel (%p312) target = $region56
        $region55: #{tpu_custom_call.1} parent=27 // pred_region
          %315 = dma.done [#allocation5], 128
        $region56: #{tpu_custom_call.1} parent=27 // pred_fallthru
          _
        // Predicated region
        $region57: #{tpu_custom_call.1} parent=27 // pred_check
          %p316 = pneg %p102
        $region58: #{tpu_custom_call.1} parent=27 // pred_check_branch
          %318 = sbr.rel (%p316) target = $region60
        $region59: #{tpu_custom_call.1} parent=27 // pred_region
          %319 = dma.done [#allocation6], 16
        $region60: #{tpu_custom_call.1} parent=27 // pred_fallthru
          _
        %320 = sfence
      $region28: #{tpu_custom_call.1} parent=5 // pred_fallthru
        _
      %p321 = scmp.le.s32.totalorder 2, %s16
      // Predicated region
      $region61: #{tpu_custom_call.1} parent=5 // pred_check
        %p322 = pneg %p321
      $region62: #{tpu_custom_call.1} parent=5 // pred_check_branch
        %324 = sbr.rel (%p322) target = $region64
      $region63: #{tpu_custom_call.1} parent=5 // pred_region
        %s325 = ssub.s32 %s16, 2
      $region64: #{tpu_custom_call.1} parent=5 // pred_fallthru
        _
    $region6: #{tpu_custom_call.1} parent=1 // loop_footer
      %s20 = sadd.s32 1, %s16
    $region7: #{tpu_custom_call.1} parent=1 // loop_footer_branch
      %15 = sbr.rel target = $region3
    $region8: #{tpu_custom_call.1} parent=1 // loop_exit
      _
    %326 = vsyncpa [#allocation4], 1
    %s327 = scalar_lea.sflag [#allocation4], 1
    %328 = vsyncpa %s327, 1
    %329 = vsyncpa [#allocation8], 1
    %330 = vsyncpa [#allocation5], 1
    %s331 = scalar_lea.sflag [#allocation5], 1
    %332 = vsyncpa %s331, 1
    %333 = vsyncpa [#allocation6], 1
    %s334 = scalar_lea.sflag [#allocation6], 1
    %335 = vsyncpa %s334, 1

</llo_original>
